<compile_context>
chip_gen: v6e
topology: v6e:2x2x1
jax: 0.10.0
libtpu: 0.0.40
codegen_flags: <defaults>
</compile_context>

<pallas_src>
import jax
import jax.numpy as jnp
from jax.experimental import pallas as pl
from jax.experimental.pallas import tpu as pltpu


def _biased_relu_kernel(x_ref, lam_ref, o_ref):
    # x_ref: (TS, TL) tile; lam_ref: (TS, 1) per-row bias broadcast over lanes.
    o_ref[...] = jnp.maximum(x_ref[...] + lam_ref[...], 0).astype(o_ref.dtype)


def _pick_tile(dim, unit, cap):
    """Largest tile that is a multiple of `unit` and <= min(dim, cap).
    If the whole dim is <= unit, use the full dim (equals the array dim,
    which also satisfies the (8,128) block constraint)."""
    if dim <= unit:
        return dim
    t = min(dim, cap)
    return max((t // unit) * unit, unit)


def biased_relu(x, lambdas, *, ts_cap=256, tl_cap=2048):
    """out = relu(x + lambdas); x: (B, C, L), lambdas: (1, C, 1)."""
    B, C, L = x.shape
    assert lambdas.shape == (1, C, 1)

    # Collapse batch into the sublane (row) axis: lane-dense output slab,
    # full sublane occupancy even when C < 8.
    rows = B * C
    x2 = x.reshape(rows, L)
    # Per-row bias (rows * 4 bytes, negligible); dtype matched to x so the
    # rounding matches a PyTorch module whose parameter dtype follows the
    # activations.
    lam2 = jnp.broadcast_to(
        lambdas.astype(x.dtype).reshape(1, C, 1), (B, C, 1)
    ).reshape(rows, 1)

    ts = _pick_tile(rows, 8, ts_cap)   # sublane tile: multiple of 8 or full dim
    tl = _pick_tile(L, 128, tl_cap)    # lane tile: multiple of 128 or full dim
    grid = (pl.cdiv(rows, ts), pl.cdiv(L, tl))

    out2 = pl.pallas_call(
        _biased_relu_kernel,
        out_shape=jax.ShapeDtypeStruct((rows, L), x.dtype),
        grid_spec=pltpu.PrefetchScalarGridSpec(
            num_scalar_prefetch=0,
            grid=grid,
            in_specs=[
                pl.BlockSpec((ts, tl), lambda r, l: (r, l)),
                pl.BlockSpec((ts, 1), lambda r, l: (r, 0)),
            ],
            out_specs=pl.BlockSpec((ts, tl), lambda r, l: (r, l)),
        ),
        compiler_params=pltpu.CompilerParams(
            dimension_semantics=("parallel", "parallel"),
            # Explicit, generation-safe limit: live footprint is ~8 MiB with
            # the caps above; 32 MiB fits v5e/v6e (128 MiB) and v7x (64 MiB).
            vmem_limit_bytes=32 * 1024 * 1024,
        ),
    )(x2, lam2)

    return out2.reshape(B, C, L)


class ReLUPallas:
    """JAX/Pallas equivalent of the PyTorch ReLU module (biased ReLU)."""

    def __init__(self, chan_num, init_lambdas=0.001):
        # matches nn.Parameter(init_lambdas * torch.ones(1, C, 1))
        self.lambdas = init_lambdas * jnp.ones((1, chan_num, 1), dtype=jnp.float32)

    def __call__(self, x):
        return biased_relu(x, self.lambdas)


if __name__ == "__main__":
    key = jax.random.PRNGKey(0)
    k1, k2 = jax.random.split(key)

    # 1) Small shape matching the module's (B, C, L) convention.
    B, C, L = 2, 4, 16
    x = jax.random.normal(k1, (B, C, L), dtype=jnp.float32)
    module = ReLUPallas(chan_num=C, init_lambdas=0.001)
    out = jax.block_until_ready(module(x))
    ref = jnp.maximum(x + module.lambdas, 0.0)
    assert out.shape == (B, C, L)
    assert jnp.allclose(out, ref, atol=1e-6), "mismatch vs reference (small shape)"

    # 2) L not a multiple of the 128-lane tile -> exercises the masked edge tile
    #    produced by the retiled BlockSpec (rows=32 -> TS=32, L=300 -> TL=256).
    B2, C2, L2 = 2, 16, 300
    x2 = jax.random.normal(k2, (B2, C2, L2), dtype=jnp.float32)
    module2 = ReLUPallas(chan_num=C2, init_lambdas=0.001)
    out2 = jax.block_until_ready(module2(x2))
    ref2 = jnp.maximum(x2 + module2.lambdas, 0.0)
    assert out2.shape == (B2, C2, L2)
    assert jnp.allclose(out2, ref2, atol=1e-6), "mismatch vs reference (edge-tile shape)"

    print("KERNEL_OK")
</pallas_src>

<mosaic_0001>
module attributes {stable_mosaic.version = 11 : i64} {
  func.func @_biased_relu_kernel(%arg0: i32, %arg1: i32, %arg2: memref<8x16xf32, #tpu.memory_space<vmem>>, %arg3: memref<8x1xf32, #tpu.memory_space<vmem>>, %arg4: memref<8x16xf32, #tpu.memory_space<vmem>>) attributes {dimension_semantics = [#tpu.dimension_semantics<parallel>, #tpu.dimension_semantics<parallel>], iteration_bounds = array<i64: 1, 1>, scalar_prefetch = 0 : i64, scratch_operands = 0 : i64, tpu.core_type = #tpu.core_type<tc>, window_params = [{transform_indices = @transform_0, window_bounds = array<i64: 8, 16>}, {transform_indices = @transform_1, window_bounds = array<i64: 8, 1>}, {transform_indices = @transform_2, window_bounds = array<i64: 8, 16>}]} {
    %c0 = arith.constant 0 : index
    %c0_0 = arith.constant 0 : index
    %0 = vector.load %arg2[%c0, %c0_0] : memref<8x16xf32, #tpu.memory_space<vmem>>, vector<8x16xf32>
    %c0_1 = arith.constant 0 : index
    %c0_2 = arith.constant 0 : index
    %1 = vector.load %arg3[%c0_1, %c0_2] : memref<8x1xf32, #tpu.memory_space<vmem>>, vector<8x1xf32>
    %2 = vector.broadcast %1 : vector<8x1xf32> to vector<8x16xf32>
    %3 = arith.addf %0, %2 : vector<8x16xf32>
    %cst = arith.constant 0.000000e+00 : f32
    %4 = vector.broadcast %cst : f32 to vector<8x16xf32>
    %5 = arith.maximumf %3, %4 : vector<8x16xf32>
    %c0_3 = arith.constant 0 : index
    %c0_4 = arith.constant 0 : index
    %6 = vector.load %arg4[%c0_3, %c0_4] : memref<8x16xf32, #tpu.memory_space<vmem>>, vector<8x16xf32>
    tpu.vector_store %arg4[%c0_3, %c0_4], %5 {strides = array<i32>} : memref<8x16xf32, #tpu.memory_space<vmem>>, vector<8x16xf32>,
    return
  }
  func.func @transform_0(%arg0: i32, %arg1: i32) -> (i32, i32) {
    %c0_i32 = arith.constant 0 : i32
    return %arg0, %arg1 : i32, i32
  }
  func.func @transform_1(%arg0: i32, %arg1: i32) -> (i32, i32) {
    %c0_i32 = arith.constant 0 : i32
    %c0_i32_0 = arith.constant 0 : i32
    return %arg0, %c0_i32 : i32, i32
  }
  func.func @transform_2(%arg0: i32, %arg1: i32) -> (i32, i32) {
    %c0_i32 = arith.constant 0 : i32
    return %arg0, %arg1 : i32, i32
  }
}

</mosaic_0001>

<llo_original>
// kernel: tpu_custom_call.1
$region0: #{tpu_custom_call.1}
  #allocation0 [shape = 'u32[]', space=smem, size = 0x4, offset = 0x4, fixed_abs, tag = 'smem constant byte address 0x4 - core index']
  #allocation1 [shape = 'u32[144,128]{1,0:T(1,128)}', space=vmem, size = 0x12000, scoped, tag = 'internal scratch']
  %s0 = inlined_call_operand.vmem [shape: f32[8,16], index: 0, kind: input, shape index: {}]
  %s1 = inlined_call_operand.vmem [shape: f32[8,1], index: 1, kind: input, shape index: {}]
  %s2 = inlined_call_operand.hbm [shape: f32[8,16], index: 2, kind: output, shape index: {}]
  %s3 = sld [smem:[#allocation0]]
  $region18: #{tpu_custom_call.1} parent=0
    _
  %s5 = ssub.s32 1, %s3
  %s6 = scalar_select 0, %s5, %s3
  $region1: #{tpu_custom_call.1} parent=0
    #allocation2 [shape = 'u8[4096]{0}', space=vmem, size = 0x1000, scoped, tag = 'output window, operand 0, single buffered']
    #allocation3 [shape = 's32[1]{0}', space=sflag, size = 0x4, scoped, tag = 'scoped memory for tpu_custom_call.1']
    %7 = vsyncpa [#allocation3], 0
    // Predicated region
    $region2: #{tpu_custom_call.1} parent=1 // pred_check
      _
    $region3: #{tpu_custom_call.1} parent=1 // pred_check_branch
      %9 = sbr.rel (0) target = $region5
    $region4: #{tpu_custom_call.1} parent=1 // pred_region
      _
    $region5: #{tpu_custom_call.1} parent=1 // pred_fallthru
      _
    // Predicated region
    $region6: #{tpu_custom_call.1} parent=1 // pred_check
      _
    $region7: #{tpu_custom_call.1} parent=1 // pred_check_branch
      %11 = sbr.rel (0) target = $region9
    $region8: #{tpu_custom_call.1} parent=1 // pred_region
      _
    $region9: #{tpu_custom_call.1} parent=1 // pred_fallthru
      _
    %v12 = vld [vmem:[%s0] sm:$0xff]
    %v13 = vld [vmem:[%s1] sm:$0xff]
    %15 = vset.pattern.permute.xlu0 0
    %16 = vperm.xlu0 %15, %v13
    %v17 = vpop.permute.xlu0 %16
    %v19 = vadd.f32 %v12, %v17
    %v20 = vmax.f32 %v19, 0.0
    %vm21 = vcmask 130048
    %22 = vst.msk [vmem:[#allocation2] sm:$0xff] %vm21, %v20
    // Predicated region
    $region10: #{tpu_custom_call.1} parent=1 // pred_check
      _
    $region11: #{tpu_custom_call.1} parent=1 // pred_check_branch
      %24 = sbr.rel (0) target = $region13
    $region12: #{tpu_custom_call.1} parent=1 // pred_region
      %s26 = ssub.s32 128, 128
      %27 = vsyncadd [#allocation3], %s26
      %s29 = sshll.u32 [#allocation2], 4
      %s30 = int_to_ptr.vmem [resolvable:$true] %s29
      %32 = dma.vmem_to_hbm [thread:$0]  %s30, 128, %s2, [#allocation3]
    $region13: #{tpu_custom_call.1} parent=1 // pred_fallthru
      _
    // Predicated region
    $region14: #{tpu_custom_call.1} parent=1 // pred_check
      _
    $region15: #{tpu_custom_call.1} parent=1 // pred_check_branch
      %34 = sbr.rel (0) target = $region17
    $region16: #{tpu_custom_call.1} parent=1 // pred_region
      %35 = dma.done [#allocation3], 128
    $region17: #{tpu_custom_call.1} parent=1 // pred_fallthru
      _
    %36 = vsyncpa [#allocation3], 1

</llo_original>
